<compile_context>
chip_gen: v7x
topology: tpu7x:2x2x1
jax: 0.10.0
libtpu: 0.0.40
codegen_flags: <defaults>
</compile_context>

<pallas_src>
import math

import jax
import jax.numpy as jnp
import numpy as np
from jax.experimental import pallas as pl
from jax.experimental.pallas import tpu as pltpu

LANES = 128


def _round_up(n, m):
    return (n + m - 1) // m * m


def model_forward_pallas(x1, x2, x3, x4, emb_w, lin_w, lin_b):
    B, S = x1.shape
    _, M, K = x2.shape
    Dv = x4.shape[-1]
    OUT, IN = lin_w.shape
    V, D = emb_w.shape
    Q = M * S * K
    assert B == 1, "forward only well-defined for batch 1"
    assert S == K, "v4 + x3 broadcast requires query len == key len"
    assert Q * Dv == IN, "flatten(v6) must match Linear in_features"
    assert D <= LANES and K <= LANES and V <= LANES

    f32 = jnp.float32
    OUT_PAD = _round_up(OUT, LANES)
    assert OUT_PAD == LANES  # TODO(synk): tile the OUT axis if OUT ever exceeds 128.
    scale = 1.0 / math.sqrt(K)

    # ---- wrapper prep (fuses into the single slab build under jit) ---------
    # Embedding row indices in PyTorch flatten order q = (m, s, i):
    #   rows [0, Q)   -> emb[x1[0, s(q)]]          (query rows)
    #   rows [Q, 2Q)  -> emb[x2[0, m(q), i(q)]]    (key rows)
    ids_v1 = jnp.tile(jnp.repeat(x1[0], K), (M,))                       # (Q,)
    ids_e2 = jnp.broadcast_to(x2[0][:, None, :], (M, S, K)).reshape(Q)  # (Q,)
    ids = jnp.concatenate([ids_v1, ids_e2]).astype(f32).reshape(2 * Q, 1)

    # x3 rows replicated so row q holds x3[0, q % K, :]  (valid since S == K).
    x3_rep = jnp.tile(x3[0].astype(f32), (Q // S, 1))                   # (Q, K)

    # Fold x4 with the Linear weight:
    #   H[j, q, o] = sum_d x4[0, j, d] * W[o, q*Dv + d]
    # so  v7[o] = b[o] + sum_{q,j} attn[q, j] * H[j, q, o].
    w3 = lin_w.astype(f32).reshape(OUT, Q, Dv)
    h = jnp.einsum("jd,oqd->jqo", x4[0].astype(f32), w3)                # (K, Q, OUT)

    # ---- pack everything into ONE lane-aligned f32 slab (1 input DMA) ------
    def blk(a, rows):
        r, c = a.shape
        return jnp.pad(a, ((0, rows - r), (0, LANES - c)))

    n_emb = _round_up(V, 8)
    n_h = _round_up(K * Q, 8)
    n_b = 8
    n_x3 = _round_up(Q, 8)
    n_ids = _round_up(2 * Q, 8)
    R_EMB = 0
    R_H = R_EMB + n_emb
    R_B = R_H + n_h
    R_X3 = R_B + n_b
    R_IDS = R_X3 + n_x3

    slab = jnp.concatenate([
        blk(emb_w.astype(f32), n_emb),                  # emb rows, lanes [0, D)
        blk(h.reshape(K * Q, OUT), n_h),                # H, zero-padded to 128 lanes
        blk(lin_b.astype(f32).reshape(1, OUT), n_b),    # bias, zero-padded lanes
        blk(x3_rep, n_x3),                              # x3 rows, lanes [0, K)
        blk(ids, n_ids),                                # ids column, lane 0
    ], axis=0)                                          # (72, 128) f32

    def kernel(slab_ref, o_ref):
        # --- fused embedding gather: one-hot (2Q,V) @ emb (V,D) on the MXU --
        ids_i = slab_ref[R_IDS:R_IDS + 2 * Q, 0:1].astype(jnp.int32)     # (2Q,1)
        onehot = (ids_i ==
                  jax.lax.broadcasted_iota(jnp.int32, (2 * Q, V), 1)
                  ).astype(f32)                                          # (2Q,V)
        emb = slab_ref[R_EMB:R_EMB + V, 0:D]                             # (V,D)
        rows = jnp.dot(onehot, emb, preferred_element_type=f32)          # (2Q,D)
        v1r = rows[:Q, :]           # emb[x1[0, s(q)]]
        e2r = rows[Q:, :]           # emb[x2[0, m(q), i(q)]]

        # --- all Q scores at once: v3[q] = <v1r[q], e2r[q]> ------------------
        scores = jnp.sum(v1r * e2r, axis=-1, keepdims=True)              # (Q,1)
        logits = scores * scale + slab_ref[R_X3:R_X3 + Q, 0:K]           # (Q,K)

        # --- whole-block softmax over the last axis (exact normalization) ---
        mx = jnp.max(logits, axis=-1, keepdims=True)
        p = jnp.exp(logits - mx)
        attn = p / jnp.sum(p, axis=-1, keepdims=True)                    # (Q,K)

        # --- fused (attn @ x4) -> flatten -> Linear --------------------------
        # contrib[q, :] = sum_j attn[q, j] * H[j, q, :]   (OUT padded to 128)
        # TODO(synk): if K grows past 2, replace this loop of lane-slice
        # broadcasts with a single dot_general against H reshaped to (Q*K, OUT).
        contrib = attn[:, 0:1] * slab_ref[R_H:R_H + Q, :]                # (Q,128)
        for j in range(1, K):
            contrib = contrib + attn[:, j:j + 1] * slab_ref[
                R_H + j * Q:R_H + (j + 1) * Q, :]
        # Sublane (XLU) reduce over q replaces the previous tiny MXU matmul.
        out = jnp.sum(contrib, axis=0, keepdims=True) + slab_ref[R_B:R_B + 1, :]
        o_ref[...] = out.astype(o_ref.dtype)                             # (1,128)

    out_pad = pl.pallas_call(
        kernel,
        out_shape=jax.ShapeDtypeStruct((1, OUT_PAD), f32),
        in_specs=[pl.BlockSpec(memory_space=pltpu.MemorySpace.VMEM)],
        out_specs=pl.BlockSpec(memory_space=pltpu.MemorySpace.VMEM),
    )(slab)
    # TODO(synk): at realistic S/M/K/V sizes, switch to a grid + BlockSpec
    # pipeline sized against v7x's 64 MiB VMEM and add dimension_semantics.
    return out_pad[:, :OUT]                                              # (1, OUT)


def model_forward_ref(x1, x2, x3, x4, emb_w, lin_w, lin_b):
    """Pure-JAX mirror of the PyTorch forward (for validation)."""
    v1 = emb_w[x1]                                   # (B, S, D)
    v2 = jnp.swapaxes(emb_w[x2], -2, -1)             # (B, M, D, K)
    v3 = jnp.matmul(v1, v2)                          # (B, M, S, K)
    v4 = (v3 / math.sqrt(v3.shape[-1]))[..., None]   # (B, M, S, K, 1)
    v5 = v4 + x3                                     # (B, M, S, K, K)
    attn = jax.nn.softmax(v5, axis=-1)
    v6 = jnp.matmul(attn, x4)                        # (B, M, S, K, Dv)
    v7 = v6.reshape(v6.shape[0], -1) @ lin_w.T + lin_b
    return v7


if __name__ == "__main__":
    B, S, M, K, D, Dv, V = 1, 2, 2, 2, 32, 4, 20
    OUT = D
    key = jax.random.PRNGKey(0)
    k1, k2, k3, k4, k5, k6, k7 = jax.random.split(key, 7)

    x1 = jax.random.randint(k1, (B, S), 0, V, dtype=jnp.int32)
    x2 = jax.random.randint(k2, (B, M, K), 0, V, dtype=jnp.int32)
    # Random (non-zero) x3 so the v4 + x3 broadcast path is actually exercised.
    x3 = jax.random.normal(k3, (B, S, K), jnp.float32)
    x4 = jax.random.normal(k7, (B, K, Dv), jnp.float32)

    # Deterministic parameters: Embedding(20, 32), Linear(32, 32)
    emb_w = jax.random.normal(k4, (V, D), jnp.float32)
    lin_w = jax.random.normal(k5, (OUT, M * S * K * Dv), jnp.float32) * 0.1
    lin_b = jax.random.normal(k6, (OUT,), jnp.float32) * 0.1

    # Highest matmul precision so the f32 XLA reference is a tight baseline.
    with jax.default_matmul_precision("highest"):
        fwd = jax.jit(model_forward_pallas)
        out = jax.block_until_ready(fwd(x1, x2, x3, x4, emb_w, lin_w, lin_b))
        ref = model_forward_ref(x1, x2, x3, x4, emb_w, lin_w, lin_b)

    assert out.shape == (B, OUT)
    np.testing.assert_allclose(np.asarray(out), np.asarray(ref),
                               rtol=1e-3, atol=1e-3)
    print("KERNEL_OK")
</pallas_src>

<mosaic_0001>
module attributes {stable_mosaic.version = 11 : i64} {
  func.func @kernel(%arg0: memref<72x128xf32, #tpu.memory_space<vmem>>, %arg1: memref<1x128xf32, #tpu.memory_space<vmem>>) attributes {dimension_semantics = [], scalar_prefetch = 0 : i64, scratch_operands = 0 : i64, tpu.core_type = #tpu.core_type<tc>} {
    %c56 = arith.constant 56 : index
    %c0 = arith.constant 0 : index
    %0 = vector.load %arg0[%c56, %c0] : memref<72x128xf32, #tpu.memory_space<vmem>>, vector<16x1xf32>
    %1 = arith.fptosi %0 : vector<16x1xf32> to vector<16x1xi32>
    %2 = tpu.iota {dimensions = array<i32: 1>} : vector<16x20xi32>
    %3 = vector.broadcast %1 : vector<16x1xi32> to vector<16x20xi32>
    %4 = arith.cmpi eq, %3, %2 : vector<16x20xi32>
    %5 = arith.extui %4 : vector<16x20xi1> to vector<16x20xi32>
    %6 = arith.sitofp %5 : vector<16x20xi32> to vector<16x20xf32>
    %c0_0 = arith.constant 0 : index
    %c0_1 = arith.constant 0 : index
    %7 = vector.load %arg0[%c0_0, %c0_1] : memref<72x128xf32, #tpu.memory_space<vmem>>, vector<20x32xf32>
    %cst = arith.constant dense<0.000000e+00> : vector<16x32xf32>
    %8 = tpu.matmul %6, %7, %cst {dimension_numbers = #tpu.dot_dimension_numbers<[1], [0], [0], [1], [0, 0, 1, 1], [], []>, precision = #tpu.contract_precision<fp32>} : vector<16x20xf32>, vector<20x32xf32>, vector<16x32xf32> -> vector<16x32xf32>
    %9 = vector.extract_strided_slice %8 {offsets = [0, 0], sizes = [8, 32], strides = [1, 1]} : vector<16x32xf32> to vector<8x32xf32>
    %10 = vector.extract_strided_slice %8 {offsets = [8, 0], sizes = [8, 32], strides = [1, 1]} : vector<16x32xf32> to vector<8x32xf32>
    %11 = arith.mulf %9, %10 : vector<8x32xf32>
    %cst_2 = arith.constant dense<0.000000e+00> : vector<8xf32>
    %12 = vector.multi_reduction <add>, %11, %cst_2 [1] : vector<8x32xf32> to vector<8xf32>
    %13 = vector.shape_cast %12 : vector<8xf32> to vector<8x1xf32>
    %cst_3 = arith.constant 0.707106769 : f32
    %14 = vector.broadcast %cst_3 : f32 to vector<8x1xf32>
    %15 = arith.mulf %13, %14 : vector<8x1xf32>
    %c48 = arith.constant 48 : index
    %c0_4 = arith.constant 0 : index
    %16 = vector.load %arg0[%c48, %c0_4] : memref<72x128xf32, #tpu.memory_space<vmem>>, vector<8x2xf32>
    %17 = vector.broadcast %15 : vector<8x1xf32> to vector<8x2xf32>
    %18 = arith.addf %17, %16 : vector<8x2xf32>
    %cst_5 = arith.constant dense<0xFF800000> : vector<8xf32>
    %19 = vector.multi_reduction <maximumf>, %18, %cst_5 [1] : vector<8x2xf32> to vector<8xf32>
    %20 = vector.shape_cast %19 : vector<8xf32> to vector<8x1xf32>
    %21 = vector.broadcast %20 : vector<8x1xf32> to vector<8x2xf32>
    %22 = arith.subf %18, %21 : vector<8x2xf32>
    %23 = math.exp %22 : vector<8x2xf32>
    %cst_6 = arith.constant dense<0.000000e+00> : vector<8xf32>
    %24 = vector.multi_reduction <add>, %23, %cst_6 [1] : vector<8x2xf32> to vector<8xf32>
    %25 = vector.shape_cast %24 : vector<8xf32> to vector<8x1xf32>
    %26 = vector.broadcast %25 : vector<8x1xf32> to vector<8x2xf32>
    %27 = arith.divf %23, %26 : vector<8x2xf32>
    %28 = vector.extract_strided_slice %27 {offsets = [0, 0], sizes = [8, 1], strides = [1, 1]} : vector<8x2xf32> to vector<8x1xf32>
    %c24 = arith.constant 24 : index
    %c0_7 = arith.constant 0 : index
    %29 = vector.load %arg0[%c24, %c0_7] : memref<72x128xf32, #tpu.memory_space<vmem>>, vector<8x128xf32>
    %30 = vector.broadcast %28 : vector<8x1xf32> to vector<8x128xf32>
    %31 = arith.mulf %30, %29 : vector<8x128xf32>
    %32 = vector.extract_strided_slice %27 {offsets = [0, 1], sizes = [8, 1], strides = [1, 1]} : vector<8x2xf32> to vector<8x1xf32>
    %c32 = arith.constant 32 : index
    %c0_8 = arith.constant 0 : index
    %33 = vector.load %arg0[%c32, %c0_8] : memref<72x128xf32, #tpu.memory_space<vmem>>, vector<8x128xf32>
    %34 = vector.broadcast %32 : vector<8x1xf32> to vector<8x128xf32>
    %35 = arith.mulf %34, %33 : vector<8x128xf32>
    %36 = arith.addf %31, %35 : vector<8x128xf32>
    %cst_9 = arith.constant dense<0.000000e+00> : vector<128xf32>
    %37 = vector.multi_reduction <add>, %36, %cst_9 [0] : vector<8x128xf32> to vector<128xf32>
    %38 = vector.shape_cast %37 : vector<128xf32> to vector<1x128xf32>
    %c40 = arith.constant 40 : index
    %c0_10 = arith.constant 0 : index
    %39 = vector.load %arg0[%c40, %c0_10] : memref<72x128xf32, #tpu.memory_space<vmem>>, vector<1x128xf32>
    %40 = arith.addf %38, %39 : vector<1x128xf32>
    %c0_11 = arith.constant 0 : index
    %c0_12 = arith.constant 0 : index
    %41 = vector.load %arg1[%c0_11, %c0_12] : memref<1x128xf32, #tpu.memory_space<vmem>>, vector<1x128xf32>
    tpu.vector_store %arg1[%c0_11, %c0_12], %40 {strides = array<i32>} : memref<1x128xf32, #tpu.memory_space<vmem>>, vector<1x128xf32>,
    return
  }
}

</mosaic_0001>

<llo_original>
// kernel: tile.10
$region0: #{tile.10}
  #allocation0 [shape = 's32[1]{0}', space=sflag, size = 0x4, scoped, tag = 'scoped memory for tile.10']
  %s0 = inlined_call_operand.vmem [shape: s32[4], index: 0, kind: input, shape index: {}]
  %s1 = inlined_call_operand.vmem [shape: s32[2,4], index: 1, kind: output, shape index: {}]
  // Predicated region
  $region2: #{tile.10} parent=0 // pred_check
    _
  $region3: #{tile.10} parent=0 // pred_check_branch
    %3 = sbr.rel (0) target = $region5
  $region4: #{tile.10} parent=0 // pred_region
    _
  $region5: #{tile.10} parent=0 // pred_fallthru
    _
  %v4 = vld [vmem:[%s0] ss:$0 sm:$0xff]
  %5 = vst [vmem:[%s1] sm:$0x3] %v4

// kernel: tile.9
$region0: #{tile.9}
  %s0 = inlined_call_operand.vmem [shape: s32[2,2], index: 0, kind: input, shape index: {}]
  %s1 = inlined_call_operand.vmem [shape: s32[4], index: 1, kind: output, shape index: {}]
  $region1: #{tile.9} parent=0
    #allocation0 [shape = 'u8[4096]{0}', space=vmem, size = 0x1000, scoped, tag = 'scoped mem for output reshape']
    #allocation1 [shape = 'u8[4096]{0}', space=vmem, size = 0x1000, scoped, tag = 'scoped mem for input reshape']
    %s3 = sshllo.u32 0, 2
    %v4 = vld [vmem:[%s0] sm:%s3]
    %5 = vst [vmem:[#allocation1] sm:%s3] %v4
    %v6 = vld [vmem:[#allocation1] sm:$0x1]
    %vm7 = vcmask 15360
    %8 = vst.msk [vmem:[#allocation0] sm:$0x1] %vm7, %v6
    %s9 = scalar_lea.vmem [#allocation1], 1
    %v10 = vld [vmem:[%s9] sm:$0x1]
    %11 = vrot.lane.b32.xlu0 %v10, 2
    %v12 = vpop.permute.xlu0 %11
    %vm13 = vcmask 31760
    %14 = vst.msk [vmem:[#allocation0] sm:$0x1] %vm13, %v12
    %s16 = sshllo.u32 0, 1
    %v18 = vld [vmem:[#allocation0] sm:%s16]
    %s19 = sshllo.u32 0, 1
    %20 = vst [vmem:[%s1] sm:%s19] %v18

// kernel: model_forward_pallas.1
$region0: #{model_forward_pallas.1}
  #allocation0 [shape = 'u32[]', space=smem, size = 0x4, offset = 0x4, fixed_abs, tag = 'smem constant byte address 0x4 - core index']
  #allocation1 [shape = 'u32[144,128]{1,0:T(1,128)}', space=vmem, size = 0x12000, scoped, tag = 'internal scratch']
  %s0 = inlined_call_operand.vmem [shape: f32[72,128], index: 0, kind: input, shape index: {}]
  %s1 = inlined_call_operand.hbm [shape: f32[1,128], index: 1, kind: output, shape index: {}]
  %s2 = sld [smem:[#allocation0]]
  $region14: #{model_forward_pallas.1} parent=0
    _
  %s4 = ssub.s32 1, %s2
  %s5 = scalar_select 0, %s4, %s2
  $region1: #{model_forward_pallas.1} parent=0
    #allocation2 [shape = 'u8[512]{0}', space=vmem, size = 0x400, scoped, tag = 'output window, operand 0, single buffered']
    #allocation3 [shape = 's32[1]{0}', space=sflag, size = 0x4, scoped, tag = 'scoped memory for model_forward_pallas.1']
    %6 = vsyncpa [#allocation3], 0
    // Predicated region
    $region2: #{model_forward_pallas.1} parent=1 // pred_check
      _
    $region3: #{model_forward_pallas.1} parent=1 // pred_check_branch
      %8 = sbr.rel (0) target = $region5
    $region4: #{model_forward_pallas.1} parent=1 // pred_region
      _
    $region5: #{model_forward_pallas.1} parent=1 // pred_fallthru
      _
    %v9 = vld [vmem:[%s0 + $0x38] sm:$0xff]
    %v10 = vld [vmem:[%s0 + $0x40] sm:$0xff]
    %v11 = vcvt.f32.s32.to.zero.pseudo %v9
    %v12 = vcvt.f32.s32.to.zero.pseudo %v10
    %v13 = vlaneseq
    %v14 = vand.u32 %v13, 127
    %15 = vset.pattern.permute.xlu0 0
    %16 = vperm.xlu0 %15, %v11
    %v17 = vpop.permute.xlu0 %16
    %18 = vset.pattern.permute.xlu0 0
    %19 = vperm.xlu0 %18, %v12
    %v20 = vpop.permute.xlu0 %19
    %vm21 = vcmp.eq.s32.totalorder %v17, %v14
    %vm22 = vcmp.eq.s32.totalorder %v20, %v14
    %v23 = vsel %vm21, 1, 0
    %v24 = vsel %vm22, 1, 0
    %v25 = vcvt.s32.f32 %v23
    %v26 = vcvt.s32.f32 %v24
    %v27 = vld [vmem:[%s0] sm:$0xff]
    %v28 = vld [vmem:[%s0 + $0x8] sm:$0xff]
    %v29 = vld [vmem:[%s0 + $0x10] sm:$0xf]
    %vm30 = vcmask 162816
    %v32 = vsel %vm30, %v25, 0
    %v35 = vsel %vm30, %v26, 0
    %vm37 = vcmask 1043456
    %v39 = vsel %vm37, %v29, 0
    %41 = vmatprep.subr.mxu0 0.0
    %v42 = vand.u32 %v27, 4294901760
    %43 = vmatpush1.msra.mxu0 %v42
    %44 = vmatprep.subr.mxu0 0.0
    %v45 = vand.u32 %v28, 4294901760
    %46 = vmatpush1.msra.mxu0 %v45
    %47 = vmatprep.subr.mxu0 0.0
    %v48 = vand.u32 %v39, 4294901760
    %49 = vmatpush1.msra.mxu0 %v48
    %50 = vmatprep.subr.mxu0 0.0
    %51 = vmatpush1.msra.mxu0 0.0
    %52 = vmatprep.subr.mxu0 0.0
    %53 = vmatpush1.msra.mxu0 0.0
    %54 = vmatprep.subr.mxu0 0.0
    %55 = vmatpush1.msra.mxu0 0.0
    %56 = vmatprep.subr.mxu0 0.0
    %57 = vmatpush1.msra.mxu0 0.0
    %58 = vmatprep.subr.mxu0 0.0
    %59 = vmatpush1.msra.mxu0 0.0
    %60 = vmatprep.subr.mxu0 0.0
    %61 = vmatpush1.msra.mxu0 0.0
    %62 = vmatprep.subr.mxu0 0.0
    %63 = vmatpush1.msra.mxu0 0.0
    %64 = vmatprep.subr.mxu0 0.0
    %65 = vmatpush1.msra.mxu0 0.0
    %66 = vmatprep.subr.mxu0 0.0
    %67 = vmatpush1.msra.mxu0 0.0
    %68 = vmatprep.subr.mxu0 0.0
    %69 = vmatpush1.msra.mxu0 0.0
    %70 = vmatprep.subr.mxu0 0.0
    %71 = vmatpush1.msra.mxu0 0.0
    %72 = vmatprep.subr.mxu0 0.0
    %73 = vmatpush1.msra.mxu0 0.0
    %74 = vmatprep.subr.mxu0 0.0
    %75 = vmatpush1.msra.mxu0 0.0
    %76 = vmatprep.subr.mxu0 0.0
    %77 = vmatpush1.msra.mxu0 0.0
    %78 = vmatprep.subr.mxu0 0.0
    %79 = vmatpush1.msra.mxu0 0.0
    %80 = vmatprep.subr.mxu0 0.0
    %81 = vmatpush1.msra.mxu0 0.0
    %82 = vmatprep.subr.mxu0 0.0
    %83 = vmatpush1.msra.mxu0 0.0
    %84 = vmatprep.subr.mxu0 0.0
    %85 = vmatpush1.msra.mxu0 0.0
    %86 = vmatprep.subr.mxu0 0.0
    %87 = vmatpush1.msra.mxu0 0.0
    %88 = vmatprep.subr.mxu0 0.0
    %89 = vmatpush1.msra.mxu0 0.0
    %90 = vmatprep.subr.mxu0 0.0
    %91 = vmatpush1.msra.mxu0 0.0
    %92 = vmatprep.subr.mxu0 0.0
    %93 = vmatpush1.msra.mxu0 0.0
    %94 = vmatprep.subr.mxu0 0.0
    %95 = vmatpush1.msra.mxu0 0.0
    %96 = vmatprep.subr.mxu0 0.0
    %97 = vmatpush1.msra.mxu0 0.0
    %98 = vmatprep.subr.mxu0 0.0
    %99 = vmatpush1.msra.mxu0 0.0
    %100 = vmatprep.subr.mxu0 0.0
    %101 = vmatpush1.msra.mxu0 0.0
    %102 = vmatprep.subr.mxu0 0.0
    %103 = vmatpush1.msra.mxu0 0.0
    %104 = vmatprep.subr.mxu0 0.0
    %105 = vmatpush1.msra.mxu0 0.0
    %106 = vmatprep.subr.mxu0 0.0
    %107 = vmatpush1.msra.mxu0 0.0
    %108 = vmatprep.mubr.f32.mxu0 0.0
    %v109 = vand.u32 %v32, 4294901760
    %v110 = vsub.f32 %v32, %v109
    %v111 = vand.u32 %v110, 4294901760
    %v112 = vsub.f32 %v110, %v111
    %v113 = vand.u32 %v112, 4294901760
    %114 = vmatmul.mubr.f32.gmra.mrb[0].mxu0 %v113
    %v115 = vpop.f32.mrb[0].mxu0
    %v116 = vadd.f32 0.0, %v115
    %v117 = vpop.f32.mrb[0].mxu0
    %118 = vmatprep.mubr.f32.mxu0 0.0
    %v119 = vand.u32 %v35, 4294901760
    %v120 = vsub.f32 %v35, %v119
    %v121 = vand.u32 %v120, 4294901760
    %v122 = vsub.f32 %v120, %v121
    %v123 = vand.u32 %v122, 4294901760
    %124 = vmatmul.mubr.f32.gmra.mrb[0].mxu0 %v123
    %v125 = vpop.f32.mrb[0].mxu0
    %v126 = vadd.f32 0.0, %v125
    %v127 = vpop.f32.mrb[0].mxu0
    %128 = vdwg.mxu0
    %129 = vmatprep.subr.mxu0 0.0
    %v130 = vand.u32 %v27, 4294901760
    %v131 = vsub.f32 %v27, %v130
    %v132 = vand.u32 %v131, 4294901760
    %v133 = vsub.f32 %v131, %v132
    %v134 = vand.u32 %v133, 4294901760
    %135 = vmatpush1.msra.mxu0 %v134
    %136 = vmatprep.subr.mxu0 0.0
    %v137 = vand.u32 %v28, 4294901760
    %v138 = vsub.f32 %v28, %v137
    %v139 = vand.u32 %v138, 4294901760
    %v140 = vsub.f32 %v138, %v139
    %v141 = vand.u32 %v140, 4294901760
    %142 = vmatpush1.msra.mxu0 %v141
    %143 = vmatprep.subr.mxu0 0.0
    %v144 = vand.u32 %v39, 4294901760
    %v145 = vsub.f32 %v39, %v144
    %v146 = vand.u32 %v145, 4294901760
    %v147 = vsub.f32 %v145, %v146
    %v148 = vand.u32 %v147, 4294901760
    %149 = vmatpush1.msra.mxu0 %v148
    %150 = vmatprep.subr.mxu0 0.0
    %151 = vmatpush1.msra.mxu0 0.0
    %152 = vmatprep.subr.mxu0 0.0
    %153 = vmatpush1.msra.mxu0 0.0
    %154 = vmatprep.subr.mxu0 0.0
    %155 = vmatpush1.msra.mxu0 0.0
    %156 = vmatprep.subr.mxu0 0.0
    %157 = vmatpush1.msra.mxu0 0.0
    %158 = vmatprep.subr.mxu0 0.0
    %159 = vmatpush1.msra.mxu0 0.0
    %160 = vmatprep.subr.mxu0 0.0
    %161 = vmatpush1.msra.mxu0 0.0
    %162 = vmatprep.subr.mxu0 0.0
    %163 = vmatpush1.msra.mxu0 0.0
    %164 = vmatprep.subr.mxu0 0.0
    %165 = vmatpush1.msra.mxu0 0.0
    %166 = vmatprep.subr.mxu0 0.0
    %167 = vmatpush1.msra.mxu0 0.0
    %168 = vmatprep.subr.mxu0 0.0
    %169 = vmatpush1.msra.mxu0 0.0
    %170 = vmatprep.subr.mxu0 0.0
    %171 = vmatpush1.msra.mxu0 0.0
    %172 = vmatprep.subr.mxu0 0.0
    %173 = vmatpush1.msra.mxu0 0.0
    %174 = vmatprep.subr.mxu0 0.0
    %175 = vmatpush1.msra.mxu0 0.0
    %176 = vmatprep.subr.mxu0 0.0
    %177 = vmatpush1.msra.mxu0 0.0
    %178 = vmatprep.subr.mxu0 0.0
    %179 = vmatpush1.msra.mxu0 0.0
    %180 = vmatprep.subr.mxu0 0.0
    %181 = vmatpush1.msra.mxu0 0.0
    %182 = vmatprep.subr.mxu0 0.0
    %183 = vmatpush1.msra.mxu0 0.0
    %184 = vmatprep.subr.mxu0 0.0
    %185 = vmatpush1.msra.mxu0 0.0
    %186 = vmatprep.subr.mxu0 0.0
    %187 = vmatpush1.msra.mxu0 0.0
    %188 = vmatprep.subr.mxu0 0.0
    %189 = vmatpush1.msra.mxu0 0.0
    %190 = vmatprep.subr.mxu0 0.0
    %191 = vmatpush1.msra.mxu0 0.0
    %192 = vmatprep.subr.mxu0 0.0
    %193 = vmatpush1.msra.mxu0 0.0
    %194 = vmatprep.subr.mxu0 0.0
    %195 = vmatpush1.msra.mxu0 0.0
    %196 = vmatprep.subr.mxu0 0.0
    %197 = vmatpush1.msra.mxu0 0.0
    %198 = vmatprep.subr.mxu0 0.0
    %199 = vmatpush1.msra.mxu0 0.0
    %200 = vmatprep.subr.mxu0 0.0
    %201 = vmatpush1.msra.mxu0 0.0
    %202 = vmatprep.subr.mxu0 0.0
    %203 = vmatpush1.msra.mxu0 0.0
    %204 = vmatprep.subr.mxu0 0.0
    %205 = vmatpush1.msra.mxu0 0.0
    %206 = vmatprep.subr.mxu0 0.0
    %207 = vmatpush1.msra.mxu0 0.0
    %208 = vmatprep.mubr.f32.mxu0 0.0
    %v209 = vand.u32 %v32, 4294901760
    %210 = vmatmul.mubr.f32.gmra.mrb[0].mxu0 %v209
    %v211 = vpop.f32.mrb[0].mxu0
    %v212 = vadd.f32 %v116, %v211
    %v213 = vpop.f32.mrb[0].mxu0
    %214 = vmatprep.mubr.f32.mxu0 0.0
    %v215 = vand.u32 %v35, 4294901760
    %216 = vmatmul.mubr.f32.gmra.mrb[0].mxu0 %v215
    %v217 = vpop.f32.mrb[0].mxu0
    %v218 = vadd.f32 %v126, %v217
    %v219 = vpop.f32.mrb[0].mxu0
    %220 = vdwg.mxu0
    %221 = vmatprep.subr.mxu0 0.0
    %v222 = vand.u32 %v27, 4294901760
    %v223 = vsub.f32 %v27, %v222
    %224 = vmatpush1.msra.mxu0 %v223
    %225 = vmatprep.subr.mxu0 0.0
    %v226 = vand.u32 %v28, 4294901760
    %v227 = vsub.f32 %v28, %v226
    %228 = vmatpush1.msra.mxu0 %v227
    %229 = vmatprep.subr.mxu0 0.0
    %v230 = vand.u32 %v39, 4294901760
    %v231 = vsub.f32 %v39, %v230
    %232 = vmatpush1.msra.mxu0 %v231
    %233 = vmatprep.subr.mxu0 0.0
    %234 = vmatpush1.msra.mxu0 0.0
    %235 = vmatprep.subr.mxu0 0.0
    %236 = vmatpush1.msra.mxu0 0.0
    %237 = vmatprep.subr.mxu0 0.0
    %238 = vmatpush1.msra.mxu0 0.0
    %239 = vmatprep.subr.mxu0 0.0
    %240 = vmatpush1.msra.mxu0 0.0
    %241 = vmatprep.subr.mxu0 0.0
    %242 = vmatpush1.msra.mxu0 0.0
    %243 = vmatprep.subr.mxu0 0.0
    %244 = vmatpush1.msra.mxu0 0.0
    %245 = vmatprep.subr.mxu0 0.0
    %246 = vmatpush1.msra.mxu0 0.0
    %247 = vmatprep.subr.mxu0 0.0
    %248 = vmatpush1.msra.mxu0 0.0
    %249 = vmatprep.subr.mxu0 0.0
    %250 = vmatpush1.msra.mxu0 0.0
    %251 = vmatprep.subr.mxu0 0.0
    %252 = vmatpush1.msra.mxu0 0.0
    %253 = vmatprep.subr.mxu0 0.0
    %254 = vmatpush1.msra.mxu0 0.0
    %255 = vmatprep.subr.mxu0 0.0
    %256 = vmatpush1.msra.mxu0 0.0
    %257 = vmatprep.subr.mxu0 0.0
    %258 = vmatpush1.msra.mxu0 0.0
    %259 = vmatprep.subr.mxu0 0.0
    %260 = vmatpush1.msra.mxu0 0.0
    %261 = vmatprep.subr.mxu0 0.0
    %262 = vmatpush1.msra.mxu0 0.0
    %263 = vmatprep.subr.mxu0 0.0
    %264 = vmatpush1.msra.mxu0 0.0
    %265 = vmatprep.subr.mxu0 0.0
    %266 = vmatpush1.msra.mxu0 0.0
    %267 = vmatprep.subr.mxu0 0.0
    %268 = vmatpush1.msra.mxu0 0.0
    %269 = vmatprep.subr.mxu0 0.0
    %270 = vmatpush1.msra.mxu0 0.0
    %271 = vmatprep.subr.mxu0 0.0
    %272 = vmatpush1.msra.mxu0 0.0
    %273 = vmatprep.subr.mxu0 0.0
    %274 = vmatpush1.msra.mxu0 0.0
    %275 = vmatprep.subr.mxu0 0.0
    %276 = vmatpush1.msra.mxu0 0.0
    %277 = vmatprep.subr.mxu0 0.0
    %278 = vmatpush1.msra.mxu0 0.0
    %279 = vmatprep.subr.mxu0 0.0
    %280 = vmatpush1.msra.mxu0 0.0
    %281 = vmatprep.subr.mxu0 0.0
    %282 = vmatpush1.msra.mxu0 0.0
    %283 = vmatprep.subr.mxu0 0.0
    %284 = vmatpush1.msra.mxu0 0.0
    %285 = vmatprep.subr.mxu0 0.0
    %286 = vmatpush1.msra.mxu0 0.0
    %287 = vmatprep.subr.mxu0 0.0
    %288 = vmatpush1.msra.mxu0 0.0
    %289 = vmatprep.subr.mxu0 0.0
    %290 = vmatpush1.msra.mxu0 0.0
    %291 = vmatprep.mubr.f32.mxu0 0.0
    %v292 = vand.u32 %v32, 4294901760
    %v293 = vsub.f32 %v32, %v292
    %294 = vmatmul.mubr.f32.gmra.mrb[0].mxu0 %v293
    %v295 = vpop.f32.mrb[0].mxu0
    %v296 = vadd.f32 %v212, %v295
    %v297 = vpop.f32.mrb[0].mxu0
    %298 = vmatprep.mubr.f32.mxu0 0.0
    %v299 = vand.u32 %v35, 4294901760
    %v300 = vsub.f32 %v35, %v299
    %301 = vmatmul.mubr.f32.gmra.mrb[0].mxu0 %v300
    %v302 = vpop.f32.mrb[0].mxu0
    %v303 = vadd.f32 %v218, %v302
    %v304 = vpop.f32.mrb[0].mxu0
    %305 = vdwg.mxu0
    %306 = vmatprep.subr.mxu0 0.0
    %v307 = vand.u32 %v27, 4294901760
    %308 = vmatpush1.msra.mxu0 %v307
    %309 = vmatprep.subr.mxu0 0.0
    %v310 = vand.u32 %v28, 4294901760
    %311 = vmatpush1.msra.mxu0 %v310
    %312 = vmatprep.subr.mxu0 0.0
    %v313 = vand.u32 %v39, 4294901760
    %314 = vmatpush1.msra.mxu0 %v313
    %315 = vmatprep.subr.mxu0 0.0
    %316 = vmatpush1.msra.mxu0 0.0
    %317 = vmatprep.subr.mxu0 0.0
    %318 = vmatpush1.msra.mxu0 0.0
    %319 = vmatprep.subr.mxu0 0.0
    %320 = vmatpush1.msra.mxu0 0.0
    %321 = vmatprep.subr.mxu0 0.0
    %322 = vmatpush1.msra.mxu0 0.0
    %323 = vmatprep.subr.mxu0 0.0
    %324 = vmatpush1.msra.mxu0 0.0
    %325 = vmatprep.subr.mxu0 0.0
    %326 = vmatpush1.msra.mxu0 0.0
    %327 = vmatprep.subr.mxu0 0.0
    %328 = vmatpush1.msra.mxu0 0.0
    %329 = vmatprep.subr.mxu0 0.0
    %330 = vmatpush1.msra.mxu0 0.0
    %331 = vmatprep.subr.mxu0 0.0
    %332 = vmatpush1.msra.mxu0 0.0
    %333 = vmatprep.subr.mxu0 0.0
    %334 = vmatpush1.msra.mxu0 0.0
    %335 = vmatprep.subr.mxu0 0.0
    %336 = vmatpush1.msra.mxu0 0.0
    %337 = vmatprep.subr.mxu0 0.0
    %338 = vmatpush1.msra.mxu0 0.0
    %339 = vmatprep.subr.mxu0 0.0
    %340 = vmatpush1.msra.mxu0 0.0
    %341 = vmatprep.subr.mxu0 0.0
    %342 = vmatpush1.msra.mxu0 0.0
    %343 = vmatprep.subr.mxu0 0.0
    %344 = vmatpush1.msra.mxu0 0.0
    %345 = vmatprep.subr.mxu0 0.0
    %346 = vmatpush1.msra.mxu0 0.0
    %347 = vmatprep.subr.mxu0 0.0
    %348 = vmatpush1.msra.mxu0 0.0
    %349 = vmatprep.subr.mxu0 0.0
    %350 = vmatpush1.msra.mxu0 0.0
    %351 = vmatprep.subr.mxu0 0.0
    %352 = vmatpush1.msra.mxu0 0.0
    %353 = vmatprep.subr.mxu0 0.0
    %354 = vmatpush1.msra.mxu0 0.0
    %355 = vmatprep.subr.mxu0 0.0
    %356 = vmatpush1.msra.mxu0 0.0
    %357 = vmatprep.subr.mxu0 0.0
    %358 = vmatpush1.msra.mxu0 0.0
    %359 = vmatprep.subr.mxu0 0.0
    %360 = vmatpush1.msra.mxu0 0.0
    %361 = vmatprep.subr.mxu0 0.0
    %362 = vmatpush1.msra.mxu0 0.0
    %363 = vmatprep.subr.mxu0 0.0
    %364 = vmatpush1.msra.mxu0 0.0
    %365 = vmatprep.subr.mxu0 0.0
    %366 = vmatpush1.msra.mxu0 0.0
    %367 = vmatprep.subr.mxu0 0.0
    %368 = vmatpush1.msra.mxu0 0.0
    %369 = vmatprep.subr.mxu0 0.0
    %370 = vmatpush1.msra.mxu0 0.0
    %371 = vmatprep.subr.mxu0 0.0
    %372 = vmatpush1.msra.mxu0 0.0
    %373 = vmatprep.mubr.f32.mxu0 0.0
    %v374 = vand.u32 %v32, 4294901760
    %v375 = vsub.f32 %v32, %v374
    %v376 = vand.u32 %v375, 4294901760
    %377 = vmatmul.mubr.f32.gmra.mrb[0].mxu0 %v376
    %v378 = vpop.f32.mrb[0].mxu0
    %v379 = vadd.f32 %v296, %v378
    %v380 = vpop.f32.mrb[0].mxu0
    %381 = vmatprep.mubr.f32.mxu0 0.0
    %v382 = vand.u32 %v35, 4294901760
    %v383 = vsub.f32 %v35, %v382
    %v384 = vand.u32 %v383, 4294901760
    %385 = vmatmul.mubr.f32.gmra.mrb[0].mxu0 %v384
    %v386 = vpop.f32.mrb[0].mxu0
    %v387 = vadd.f32 %v303, %v386
    %v388 = vpop.f32.mrb[0].mxu0
    %389 = vdwg.mxu0
    %390 = vmatprep.subr.mxu0 0.0
    %v391 = vand.u32 %v27, 4294901760
    %v392 = vsub.f32 %v27, %v391
    %v393 = vand.u32 %v392, 4294901760
    %394 = vmatpush1.msra.mxu0 %v393
    %395 = vmatprep.subr.mxu0 0.0
    %v396 = vand.u32 %v28, 4294901760
    %v397 = vsub.f32 %v28, %v396
    %v398 = vand.u32 %v397, 4294901760
    %399 = vmatpush1.msra.mxu0 %v398
    %400 = vmatprep.subr.mxu0 0.0
    %v401 = vand.u32 %v39, 4294901760
    %v402 = vsub.f32 %v39, %v401
    %v403 = vand.u32 %v402, 4294901760
    %404 = vmatpush1.msra.mxu0 %v403
    %405 = vmatprep.subr.mxu0 0.0
    %406 = vmatpush1.msra.mxu0 0.0
    %407 = vmatprep.subr.mxu0 0.0
    %408 = vmatpush1.msra.mxu0 0.0
    %409 = vmatprep.subr.mxu0 0.0
    %410 = vmatpush1.msra.mxu0 0.0
    %411 = vmatprep.subr.mxu0 0.0
    %412 = vmatpush1.msra.mxu0 0.0
    %413 = vmatprep.subr.mxu0 0.0
    %414 = vmatpush1.msra.mxu0 0.0
    %415 = vmatprep.subr.mxu0 0.0
    %416 = vmatpush1.msra.mxu0 0.0
    %417 = vmatprep.subr.mxu0 0.0
    %418 = vmatpush1.msra.mxu0 0.0
    %419 = vmatprep.subr.mxu0 0.0
    %420 = vmatpush1.msra.mxu0 0.0
    %421 = vmatprep.subr.mxu0 0.0
    %422 = vmatpush1.msra.mxu0 0.0
    %423 = vmatprep.subr.mxu0 0.0
    %424 = vmatpush1.msra.mxu0 0.0
    %425 = vmatprep.subr.mxu0 0.0
    %426 = vmatpush1.msra.mxu0 0.0
    %427 = vmatprep.subr.mxu0 0.0
    %428 = vmatpush1.msra.mxu0 0.0
    %429 = vmatprep.subr.mxu0 0.0
    %430 = vmatpush1.msra.mxu0 0.0
    %431 = vmatprep.subr.mxu0 0.0
    %432 = vmatpush1.msra.mxu0 0.0
    %433 = vmatprep.subr.mxu0 0.0
    %434 = vmatpush1.msra.mxu0 0.0
    %435 = vmatprep.subr.mxu0 0.0
    %436 = vmatpush1.msra.mxu0 0.0
    %437 = vmatprep.subr.mxu0 0.0
    %438 = vmatpush1.msra.mxu0 0.0
    %439 = vmatprep.subr.mxu0 0.0
    %440 = vmatpush1.msra.mxu0 0.0
    %441 = vmatprep.subr.mxu0 0.0
    %442 = vmatpush1.msra.mxu0 0.0
    %443 = vmatprep.subr.mxu0 0.0
    %444 = vmatpush1.msra.mxu0 0.0
    %445 = vmatprep.subr.mxu0 0.0
    %446 = vmatpush1.msra.mxu0 0.0
    %447 = vmatprep.subr.mxu0 0.0
    %448 = vmatpush1.msra.mxu0 0.0
    %449 = vmatprep.subr.mxu0 0.0
    %450 = vmatpush1.msra.mxu0 0.0
    %451 = vmatprep.subr.mxu0 0.0
    %452 = vmatpush1.msra.mxu0 0.0
    %453 = vmatprep.subr.mxu0 0.0
    %454 = vmatpush1.msra.mxu0 0.0
    %455 = vmatprep.subr.mxu0 0.0
    %456 = vmatpush1.msra.mxu0 0.0
    %457 = vmatprep.subr.mxu0 0.0
    %458 = vmatpush1.msra.mxu0 0.0
    %459 = vmatprep.subr.mxu0 0.0
    %460 = vmatpush1.msra.mxu0 0.0
    %461 = vmatprep.subr.mxu0 0.0
    %462 = vmatpush1.msra.mxu0 0.0
    %463 = vmatprep.mubr.f32.mxu0 0.0
    %v464 = vand.u32 %v32, 4294901760
    %465 = vmatmul.mubr.f32.gmra.mrb[0].mxu0 %v464
    %v466 = vpop.f32.mrb[0].mxu0
    %v467 = vadd.f32 %v379, %v466
    %v468 = vpop.f32.mrb[0].mxu0
    %469 = vmatprep.mubr.f32.mxu0 0.0
    %v470 = vand.u32 %v35, 4294901760
    %471 = vmatmul.mubr.f32.gmra.mrb[0].mxu0 %v470
    %v472 = vpop.f32.mrb[0].mxu0
    %v473 = vadd.f32 %v387, %v472
    %v474 = vpop.f32.mrb[0].mxu0
    %475 = vdwg.mxu0
    %476 = vmatprep.subr.mxu0 0.0
    %v477 = vand.u32 %v27, 4294901760
    %478 = vmatpush1.msra.mxu0 %v477
    %479 = vmatprep.subr.mxu0 0.0
    %v480 = vand.u32 %v28, 4294901760
    %481 = vmatpush1.msra.mxu0 %v480
    %482 = vmatprep.subr.mxu0 0.0
    %v483 = vand.u32 %v39, 4294901760
    %484 = vmatpush1.msra.mxu0 %v483
    %485 = vmatprep.subr.mxu0 0.0
    %486 = vmatpush1.msra.mxu0 0.0
    %487 = vmatprep.subr.mxu0 0.0
    %488 = vmatpush1.msra.mxu0 0.0
    %489 = vmatprep.subr.mxu0 0.0
    %490 = vmatpush1.msra.mxu0 0.0
    %491 = vmatprep.subr.mxu0 0.0
    %492 = vmatpush1.msra.mxu0 0.0
    %493 = vmatprep.subr.mxu0 0.0
    %494 = vmatpush1.msra.mxu0 0.0
    %495 = vmatprep.subr.mxu0 0.0
    %496 = vmatpush1.msra.mxu0 0.0
    %497 = vmatprep.subr.mxu0 0.0
    %498 = vmatpush1.msra.mxu0 0.0
    %499 = vmatprep.subr.mxu0 0.0
    %500 = vmatpush1.msra.mxu0 0.0
    %501 = vmatprep.subr.mxu0 0.0
    %502 = vmatpush1.msra.mxu0 0.0
    %503 = vmatprep.subr.mxu0 0.0
    %504 = vmatpush1.msra.mxu0 0.0
    %505 = vmatprep.subr.mxu0 0.0
    %506 = vmatpush1.msra.mxu0 0.0
    %507 = vmatprep.subr.mxu0 0.0
    %508 = vmatpush1.msra.mxu0 0.0
    %509 = vmatprep.subr.mxu0 0.0
    %510 = vmatpush1.msra.mxu0 0.0
    %511 = vmatprep.subr.mxu0 0.0
    %512 = vmatpush1.msra.mxu0 0.0
    %513 = vmatprep.subr.mxu0 0.0
    %514 = vmatpush1.msra.mxu0 0.0
    %515 = vmatprep.subr.mxu0 0.0
    %516 = vmatpush1.msra.mxu0 0.0
    %517 = vmatprep.subr.mxu0 0.0
    %518 = vmatpush1.msra.mxu0 0.0
    %519 = vmatprep.subr.mxu0 0.0
    %520 = vmatpush1.msra.mxu0 0.0
    %521 = vmatprep.subr.mxu0 0.0
    %522 = vmatpush1.msra.mxu0 0.0
    %523 = vmatprep.subr.mxu0 0.0
    %524 = vmatpush1.msra.mxu0 0.0
    %525 = vmatprep.subr.mxu0 0.0
    %526 = vmatpush1.msra.mxu0 0.0
    %527 = vmatprep.subr.mxu0 0.0
    %528 = vmatpush1.msra.mxu0 0.0
    %529 = vmatprep.subr.mxu0 0.0
    %530 = vmatpush1.msra.mxu0 0.0
    %531 = vmatprep.subr.mxu0 0.0
    %532 = vmatpush1.msra.mxu0 0.0
    %533 = vmatprep.subr.mxu0 0.0
    %534 = vmatpush1.msra.mxu0 0.0
    %535 = vmatprep.subr.mxu0 0.0
    %536 = vmatpush1.msra.mxu0 0.0
    %537 = vmatprep.subr.mxu0 0.0
    %538 = vmatpush1.msra.mxu0 0.0
    %539 = vmatprep.subr.mxu0 0.0
    %540 = vmatpush1.msra.mxu0 0.0
    %541 = vmatprep.subr.mxu0 0.0
    %542 = vmatpush1.msra.mxu0 0.0
    %543 = vmatprep.mubr.f32.mxu0 0.0
    %v544 = vand.u32 %v32, 4294901760
    %545 = vmatmul.mubr.f32.gmra.mrb[0].mxu0 %v544
    %v546 = vpop.f32.mrb[0].mxu0
    %v547 = vadd.f32 %v467, %v546
    %v548 = vpop.f32.mrb[0].mxu0
    %549 = vmatprep.mubr.f32.mxu0 0.0
    %v550 = vand.u32 %v35, 4294901760
    %551 = vmatmul.mubr.f32.gmra.mrb[0].mxu0 %v550
    %v552 = vpop.f32.mrb[0].mxu0
    %v553 = vadd.f32 %v473, %v552
    %v554 = vpop.f32.mrb[0].mxu0
    %555 = vdwg.mxu0
    %v556 = vmul.f32 %v547, %v553
    %vm557 = vcmask 261120
    %v558 = vsel %vm557, %v556, 0.0
    %559 = vadd.xlane.f32.xlu0 %v558
    %v560 = vpop.xlane.xlu0 %559
    %v561 = vmul.f32 %v560, 0.70710677
    %v562 = vld [vmem:[%s0 + $0x30] sm:$0xff]
    %v563 = vadd.f32 %v561, %v562
    %vm564 = vcmask 15360
    %v565 = vsel %vm564, %v563, -inf
    %566 = vmax.xlane.f32.xlu0 %v565
    %v567 = vpop.xlane.xlu0 %566
    %v568 = vsub.f32 %v563, %v567
    %v569 = vmul.f32 %v568, 1.442695
    %v570 = vpow.pop %v569
    %v571 = vsel %vm564, %v570, 0.0
    %572 = vadd.xlane.f32.xlu0 %v571
    %v573 = vpop.xlane.xlu0 %572
    %v574 = vrcp.pop %v573
    %v575 = vmul.f32 %v570, %v574
    %v576 = vld [vmem:[%s0 + $0x18] sm:$0xff]
    %578 = vset.pattern.permute.xlu0 0
    %579 = vperm.xlu0 %578, %v575
    %v580 = vpop.permute.xlu0 %579
    %v582 = vmul.f32 %v580, %v576
    %v583 = vld [vmem:[%s0 + $0x20] sm:$0xff]
    %584 = vset.pattern.permute.xlu0 1
    %585 = vperm.xlu0 %584, %v575
    %v586 = vpop.permute.xlu0 %585
    %v588 = vmul.f32 %v586, %v583
    %v589 = vadd.f32 %v582, %v588
    %v590 = vrot.slane %v589, 4
    %v591 = vadd.f32 %v589, %v590
    %v592 = vrot.slane %v591, 2
    %v593 = vadd.f32 %v591, %v592
    %v594 = vrot.slane %v593, 1
    %v595 = vadd.f32 %v593, %v594
    %v596 = vld [vmem:[%s0 + $0x28] sm:$0x1]
    %v597 = vadd.f32 %v595, %v596
    %598 = vst [vmem:[#allocation2] sm:$0x1] %v597
    // Predicated region
    $region6: #{model_forward_pallas.1} parent=1 // pred_check
      _
    $region7: #{model_forward_pallas.1} parent=1 // pred_check_branch
      %600 = sbr.rel (0) target = $region9
    $region8: #{model_forward_pallas.1} parent=1 // pred_region
      %s602 = ssub.s32 16, 16
      %603 = vsyncadd [#allocation3], %s602
      %s605 = sshll.u32 [#allocation2], 4
      %s606 = int_to_ptr.vmem [resolvable:$true] %s605
      %608 = dma.vmem_to_hbm [thread:$0]  %s606, 16, %s1, [#allocation3]
    $region9: #{model_forward_pallas.1} parent=1 // pred_fallthru
      _
    // Predicated region
    $region10: #{model_forward_pallas.1} parent=1 // pred_check
      _
    $region11: #{model_forward_pallas.1} parent=1 // pred_check_branch
      %610 = sbr.rel (0) target = $region13
    $region12: #{model_forward_pallas.1} parent=1 // pred_region
      %611 = dma.done [#allocation3], 16
    $region13: #{model_forward_pallas.1} parent=1 // pred_fallthru
      _
    %612 = vsyncpa [#allocation3], 1

</llo_original>
